<compile_context>
chip_gen: v7x
topology: tpu7x:2x2x1
jax: 0.10.0
libtpu: 0.0.40
codegen_flags: <defaults>
</compile_context>

<pallas_src>
import functools

import jax
import jax.numpy as jnp
from jax import lax
from jax.experimental import pallas as pl
from jax.experimental.pallas import tpu as pltpu


def _channel_attention_kernel(x_ref, w1_ref, w2_ref, o_ref, sum_ref, max_ref,
                              *, hw, hw_tile, needs_mask):
    # x_ref:   (1, C, HW_TILE)  -- one spatial slab of one batch element
    # w1_ref:  (C_mid, C)       -- fc1 weight (C_out, C_in), as in PyTorch
    # w2_ref:  (C, C_mid)       -- fc2 weight (C_out, C_in), as in PyTorch
    # o_ref:   (1, C, 1)
    # sum_ref, max_ref: (C, 1) f32 scratch accumulators
    k = pl.program_id(1)
    nk = pl.num_programs(1)

    # Load the tile once; cast per tile (keeps f32 accumulation for bf16 inputs
    # without materializing an f32 copy of the whole feature map).
    x = x_ref[0].astype(jnp.float32)                       # (C, HW_TILE)

    if needs_mask:
        lane = lax.broadcasted_iota(jnp.int32, x.shape, dimension=1)
        valid = (k * hw_tile + lane) < hw
        x_sum = jnp.where(valid, x, 0.0)
        x_max = jnp.where(valid, x, jnp.finfo(jnp.float32).min)
    else:
        x_sum = x
        x_max = x

    # Fused single-pass partial reductions (lane axis), kept in (C, 1) layout.
    part_sum = jnp.sum(x_sum, axis=-1, keepdims=True)       # (C, 1)
    part_max = jnp.max(x_max, axis=-1, keepdims=True)       # (C, 1)

    @pl.when(k == 0)
    def _init():
        sum_ref[...] = part_sum
        max_ref[...] = part_max

    @pl.when(k > 0)
    def _accum():
        sum_ref[...] += part_sum
        max_ref[...] = jnp.maximum(max_ref[...], part_max)

    @pl.when(k == nk - 1)
    def _finalize():
        inv_hw = jnp.float32(1.0 / hw)
        # Merge avg & max branches into a single (C, 2) operand -> one matmul
        # per layer instead of two.
        pooled = jnp.concatenate([sum_ref[...] * inv_hw, max_ref[...]], axis=1)

        w1 = w1_ref[...].astype(jnp.float32)                 # (C_mid, C_in)
        w2 = w2_ref[...].astype(jnp.float32)                 # (C, C_mid)
        # 1x1 conv == channel matmul; contract the C_in axis of the weight
        # directly (no wrapper-side transpose needed).
        h = lax.dot_general(w1, pooled, (((1,), (0,)), ((), ())),
                            preferred_element_type=jnp.float32)   # (C_mid, 2)
        h = jnp.maximum(h, 0.0)                                     # ReLU
        y = lax.dot_general(w2, h, (((1,), (0,)), ((), ())),
                            preferred_element_type=jnp.float32)   # (C, 2)
        y = y[:, 0:1] + y[:, 1:2]                                   # avg + max branch
        o_ref[...] = jax.nn.sigmoid(y)[None].astype(o_ref.dtype)   # (1, C, 1)


def channel_attention(x, w1, w2, *, max_tile_bytes=4 * 1024 * 1024):
    """x: (N, C, H, W); w1: (C_mid, C), w2: (C, C_mid) 1x1-conv weights (C_out, C_in).

    Returns (N, C, 1, 1) = sigmoid(fc2(relu(fc1(avgpool(x)))) + fc2(relu(fc1(maxpool(x))))).
    """
    N, C, H, W = x.shape
    HW = H * W
    C_mid = w1.shape[0]
    assert w1.shape == (C_mid, C) and w2.shape == (C, C_mid)

    x_flat = x.reshape(N, C, HW)

    # Pick the spatial tile: biggest multiple of 128 whose (double-buffered)
    # input slab stays within ~max_tile_bytes per buffer; this keeps VMEM use
    # bounded on v7x (64 MiB physical / 32 MiB default scoped) regardless of H*W.
    itemsize = jnp.dtype(x.dtype).itemsize
    max_lanes = max(128, (max_tile_bytes // (C * itemsize)) // 128 * 128)
    hw_tile = HW if HW <= max_lanes else max_lanes
    num_k = pl.cdiv(HW, hw_tile)
    needs_mask = (HW % hw_tile) != 0

    kernel = functools.partial(_channel_attention_kernel,
                               hw=HW, hw_tile=hw_tile, needs_mask=needs_mask)

    out = pl.pallas_call(
        kernel,
        out_shape=jax.ShapeDtypeStruct((N, C, 1), x.dtype),
        grid_spec=pltpu.PrefetchScalarGridSpec(
            num_scalar_prefetch=0,
            grid=(N, num_k),
            in_specs=[
                pl.BlockSpec((1, C, hw_tile), lambda i, k: (i, 0, k)),
                pl.BlockSpec((C_mid, C), lambda i, k: (0, 0)),   # resident weights
                pl.BlockSpec((C, C_mid), lambda i, k: (0, 0)),
            ],
            out_specs=pl.BlockSpec((1, C, 1), lambda i, k: (i, 0, 0)),
            scratch_shapes=[
                pltpu.VMEM((C, 1), jnp.float32),   # running sum
                pltpu.VMEM((C, 1), jnp.float32),   # running max
            ],
        ),
        compiler_params=pltpu.CompilerParams(
            dimension_semantics=("parallel", "arbitrary"),
            vmem_limit_bytes=32 * 1024 * 1024,
        ),
    )(x_flat, w1, w2)

    return out.reshape(N, C, 1, 1)


def _reference(x, w1, w2):
    # Pure-JAX reference of the PyTorch forward.
    avg = jnp.mean(x, axis=(2, 3))                       # (N, C)
    mx = jnp.max(x, axis=(2, 3))                         # (N, C)

    def mlp(v):
        h = jnp.maximum(v @ w1.T, 0.0)
        return h @ w2.T

    return jax.nn.sigmoid(mlp(avg) + mlp(mx))[:, :, None, None]


if __name__ == "__main__":
    key = jax.random.PRNGKey(0)
    kx, k1, k2, kx2, k3, k4 = jax.random.split(key, 6)

    # --- Test 1: module-sized small shapes (single spatial tile path) ---
    N, C, H, W = 2, 4, 16, 16
    x = jax.random.normal(kx, (N, C, H, W), dtype=jnp.float32)
    w1 = 0.3 * jax.random.normal(k1, (C, C), dtype=jnp.float32)   # fc1 (C_out, C_in)
    w2 = 0.3 * jax.random.normal(k2, (C, C), dtype=jnp.float32)   # fc2 (C_out, C_in)

    out = jax.block_until_ready(channel_attention(x, w1, w2))
    ref = _reference(x, w1, w2)
    assert out.shape == (N, C, 1, 1)
    assert jnp.allclose(out, ref, atol=1e-5, rtol=1e-5)

    # --- Test 2: exercise the tiled-reduction + ragged-last-tile path ---
    N2, C2, H2, W2 = 2, 8, 48, 48                                  # HW = 2304
    x2 = jax.random.normal(kx2, (N2, C2, H2, W2), dtype=jnp.float32)
    w1b = 0.2 * jax.random.normal(k3, (C2, C2), dtype=jnp.float32)
    w2b = 0.2 * jax.random.normal(k4, (C2, C2), dtype=jnp.float32)

    # Force hw_tile=512 -> 5 tiles, last one partial (masked in-kernel).
    out2 = jax.block_until_ready(
        channel_attention(x2, w1b, w2b, max_tile_bytes=16 * 1024))
    ref2 = _reference(x2, w1b, w2b)
    assert out2.shape == (N2, C2, 1, 1)
    assert jnp.allclose(out2, ref2, atol=1e-5, rtol=1e-5)

    print("KERNEL_OK")
</pallas_src>

<mosaic_0001>
module attributes {stable_mosaic.version = 11 : i64} {
  func.func @_channel_attention_kernel(%arg0: i32, %arg1: i32, %arg2: memref<1x4x256xf32, #tpu.memory_space<vmem>>, %arg3: memref<4x4xf32, #tpu.memory_space<vmem>>, %arg4: memref<4x4xf32, #tpu.memory_space<vmem>>, %arg5: memref<1x4x1xf32, #tpu.memory_space<vmem>>, %arg6: memref<4x1xf32, #tpu.memory_space<vmem>>, %arg7: memref<4x1xf32, #tpu.memory_space<vmem>>) attributes {dimension_semantics = [#tpu.dimension_semantics<parallel>, #tpu.dimension_semantics<arbitrary>], iteration_bounds = array<i64: 2, 1>, scalar_prefetch = 0 : i64, scratch_operands = 2 : i64, tpu.core_type = #tpu.core_type<tc>, window_params = [{transform_indices = @transform_0, window_bounds = array<i64: 1, 4, 256>}, {pipeline_mode = #tpu.pipeline_mode<synchronous>, transform_indices = @transform_1, window_bounds = array<i64: 4, 4>}, {pipeline_mode = #tpu.pipeline_mode<synchronous>, transform_indices = @transform_2, window_bounds = array<i64: 4, 4>}, {transform_indices = @transform_3, window_bounds = array<i64: 1, 4, 1>}]} {
    %c0 = arith.constant 0 : index
    %c0_0 = arith.constant 0 : index
    %c0_1 = arith.constant 0 : index
    %0 = vector.load %arg2[%c0, %c0_0, %c0_1] : memref<1x4x256xf32, #tpu.memory_space<vmem>>, vector<1x4x256xf32>
    %1 = vector.shape_cast %0 : vector<1x4x256xf32> to vector<4x256xf32>
    %cst = arith.constant dense<0.000000e+00> : vector<4xf32>
    %2 = vector.multi_reduction <add>, %1, %cst [1] : vector<4x256xf32> to vector<4xf32>
    %3 = vector.shape_cast %2 : vector<4xf32> to vector<4x1xf32>
    %cst_2 = arith.constant dense<0xFF800000> : vector<4xf32>
    %4 = vector.multi_reduction <maximumf>, %1, %cst_2 [1] : vector<4x256xf32> to vector<4xf32>
    %5 = vector.shape_cast %4 : vector<4xf32> to vector<4x1xf32>
    %c0_i32 = arith.constant 0 : i32
    %6 = arith.cmpi eq, %arg1, %c0_i32 : i32
    %7 = arith.extui %6 : i1 to i32
    %c0_i32_3 = arith.constant 0 : i32
    %8 = arith.cmpi ne, %7, %c0_i32_3 : i32
    scf.if %8 {
      %c0_8 = arith.constant 0 : index
      %c0_9 = arith.constant 0 : index
      %15 = vector.load %arg6[%c0_8, %c0_9] : memref<4x1xf32, #tpu.memory_space<vmem>>, vector<4x1xf32>
      tpu.vector_store %arg6[%c0_8, %c0_9], %3 {strides = array<i32>} : memref<4x1xf32, #tpu.memory_space<vmem>>, vector<4x1xf32>,
      %c0_10 = arith.constant 0 : index
      %c0_11 = arith.constant 0 : index
      %16 = vector.load %arg7[%c0_10, %c0_11] : memref<4x1xf32, #tpu.memory_space<vmem>>, vector<4x1xf32>
      tpu.vector_store %arg7[%c0_10, %c0_11], %5 {strides = array<i32>} : memref<4x1xf32, #tpu.memory_space<vmem>>, vector<4x1xf32>,
    } else {
    }
    %c0_i32_4 = arith.constant 0 : i32
    %9 = arith.cmpi sgt, %arg1, %c0_i32_4 : i32
    %10 = arith.extui %9 : i1 to i32
    %c0_i32_5 = arith.constant 0 : i32
    %11 = arith.cmpi ne, %10, %c0_i32_5 : i32
    scf.if %11 {
      %c0_8 = arith.constant 0 : index
      %c0_9 = arith.constant 0 : index
      %15 = vector.load %arg6[%c0_8, %c0_9] : memref<4x1xf32, #tpu.memory_space<vmem>>, vector<4x1xf32>
      %16 = arith.addf %15, %3 : vector<4x1xf32>
      %c0_10 = arith.constant 0 : index
      %c0_11 = arith.constant 0 : index
      %17 = vector.load %arg6[%c0_10, %c0_11] : memref<4x1xf32, #tpu.memory_space<vmem>>, vector<4x1xf32>
      tpu.vector_store %arg6[%c0_10, %c0_11], %16 {strides = array<i32>} : memref<4x1xf32, #tpu.memory_space<vmem>>, vector<4x1xf32>,
      %c0_12 = arith.constant 0 : index
      %c0_13 = arith.constant 0 : index
      %18 = vector.load %arg7[%c0_12, %c0_13] : memref<4x1xf32, #tpu.memory_space<vmem>>, vector<4x1xf32>
      %19 = arith.maximumf %18, %5 : vector<4x1xf32>
      %c0_14 = arith.constant 0 : index
      %c0_15 = arith.constant 0 : index
      %20 = vector.load %arg7[%c0_14, %c0_15] : memref<4x1xf32, #tpu.memory_space<vmem>>, vector<4x1xf32>
      tpu.vector_store %arg7[%c0_14, %c0_15], %19 {strides = array<i32>} : memref<4x1xf32, #tpu.memory_space<vmem>>, vector<4x1xf32>,
    } else {
    }
    %c0_i32_6 = arith.constant 0 : i32
    %12 = arith.cmpi eq, %arg1, %c0_i32_6 : i32
    %13 = arith.extui %12 : i1 to i32
    %c0_i32_7 = arith.constant 0 : i32
    %14 = arith.cmpi ne, %13, %c0_i32_7 : i32
    scf.if %14 {
      %c0_8 = arith.constant 0 : index
      %c0_9 = arith.constant 0 : index
      %15 = vector.load %arg6[%c0_8, %c0_9] : memref<4x1xf32, #tpu.memory_space<vmem>>, vector<4x1xf32>
      %cst_10 = arith.constant 3.906250e-03 : f32
      %16 = vector.broadcast %cst_10 : f32 to vector<4x1xf32>
      %17 = arith.mulf %15, %16 : vector<4x1xf32>
      %c0_11 = arith.constant 0 : index
      %c0_12 = arith.constant 0 : index
      %18 = vector.load %arg7[%c0_11, %c0_12] : memref<4x1xf32, #tpu.memory_space<vmem>>, vector<4x1xf32>
      %19 = tpu.concatenate %17, %18 in 1 : vector<4x1xf32>, vector<4x1xf32> -> vector<4x2xf32>
      %c0_13 = arith.constant 0 : index
      %c0_14 = arith.constant 0 : index
      %20 = vector.load %arg3[%c0_13, %c0_14] : memref<4x4xf32, #tpu.memory_space<vmem>>, vector<4x4xf32>
      %c0_15 = arith.constant 0 : index
      %c0_16 = arith.constant 0 : index
      %21 = vector.load %arg4[%c0_15, %c0_16] : memref<4x4xf32, #tpu.memory_space<vmem>>, vector<4x4xf32>
      %cst_17 = arith.constant dense<0.000000e+00> : vector<4x2xf32>
      %22 = tpu.matmul %20, %19, %cst_17 {dimension_numbers = #tpu.dot_dimension_numbers<[1], [0], [0], [1], [0, 0, 1, 1], [], []>} : vector<4x4xf32>, vector<4x2xf32>, vector<4x2xf32> -> vector<4x2xf32>
      %cst_18 = arith.constant 0.000000e+00 : f32
      %23 = vector.broadcast %cst_18 : f32 to vector<4x2xf32>
      %24 = arith.maximumf %22, %23 : vector<4x2xf32>
      %cst_19 = arith.constant dense<0.000000e+00> : vector<4x2xf32>
      %25 = tpu.matmul %21, %24, %cst_19 {dimension_numbers = #tpu.dot_dimension_numbers<[1], [0], [0], [1], [0, 0, 1, 1], [], []>} : vector<4x4xf32>, vector<4x2xf32>, vector<4x2xf32> -> vector<4x2xf32>
      %26 = vector.extract_strided_slice %25 {offsets = [0, 0], sizes = [4, 1], strides = [1, 1]} : vector<4x2xf32> to vector<4x1xf32>
      %27 = vector.extract_strided_slice %25 {offsets = [0, 1], sizes = [4, 1], strides = [1, 1]} : vector<4x2xf32> to vector<4x1xf32>
      %28 = arith.addf %26, %27 : vector<4x1xf32>
      %29 = arith.negf %28 : vector<4x1xf32>
      %30 = math.exp %29 : vector<4x1xf32>
      %cst_20 = arith.constant 1.000000e+00 : f32
      %31 = vector.broadcast %cst_20 : f32 to vector<4x1xf32>
      %32 = arith.addf %31, %30 : vector<4x1xf32>
      %33 = arith.divf %31, %32 : vector<4x1xf32>
      %34 = vector.shape_cast %33 : vector<4x1xf32> to vector<1x4x1xf32>
      %c0_21 = arith.constant 0 : index
      %c0_22 = arith.constant 0 : index
      %c0_23 = arith.constant 0 : index
      %35 = vector.load %arg5[%c0_21, %c0_22, %c0_23] : memref<1x4x1xf32, #tpu.memory_space<vmem>>, vector<1x4x1xf32>
      tpu.vector_store %arg5[%c0_21, %c0_22, %c0_23], %34 {strides = array<i32>} : memref<1x4x1xf32, #tpu.memory_space<vmem>>, vector<1x4x1xf32>,
    } else {
    }
    return
  }
  func.func @transform_0(%arg0: i32, %arg1: i32) -> (i32, i32, i32) {
    %c0_i32 = arith.constant 0 : i32
    %c0_i32_0 = arith.constant 0 : i32
    return %arg0, %c0_i32, %arg1 : i32, i32, i32
  }
  func.func @transform_1(%arg0: i32, %arg1: i32) -> (i32, i32) {
    %c0_i32 = arith.constant 0 : i32
    %c0_i32_0 = arith.constant 0 : i32
    %c0_i32_1 = arith.constant 0 : i32
    return %c0_i32, %c0_i32_0 : i32, i32
  }
  func.func @transform_2(%arg0: i32, %arg1: i32) -> (i32, i32) {
    %c0_i32 = arith.constant 0 : i32
    %c0_i32_0 = arith.constant 0 : i32
    %c0_i32_1 = arith.constant 0 : i32
    return %c0_i32, %c0_i32_0 : i32, i32
  }
  func.func @transform_3(%arg0: i32, %arg1: i32) -> (i32, i32, i32) {
    %c0_i32 = arith.constant 0 : i32
    %c0_i32_0 = arith.constant 0 : i32
    %c0_i32_1 = arith.constant 0 : i32
    return %arg0, %c0_i32, %c0_i32_0 : i32, i32, i32
  }
}

</mosaic_0001>

<llo_original>
// kernel: tpu_custom_call.1
$region0: #{tpu_custom_call.1}
  #allocation0 [shape = 'u32[]', space=smem, size = 0x4, offset = 0x4, fixed_abs, tag = 'smem constant byte address 0x4 - core index']
  #allocation1 [shape = 'u32[144,128]{1,0:T(1,128)}', space=vmem, size = 0x12000, scoped, tag = 'internal scratch']
  #allocation2 [shape = 'f32[4,1]{1,0:T(4,128)}', space=vmem, size = 0x800, scoped, tag = 'scratch operand']
  #allocation3 [shape = 'f32[4,1]{1,0:T(4,128)}', space=vmem, size = 0x800, scoped, tag = 'scratch operand']
  %s0 = inlined_call_operand.hbm [shape: f32[2,4,256], index: 0, kind: input, shape index: {}]
  %s1 = inlined_call_operand.hbm [shape: f32[4,4], index: 1, kind: input, shape index: {}]
  %s2 = inlined_call_operand.vmem [shape: f32[4,4], index: 2, kind: input, shape index: {}]
  %s3 = inlined_call_operand.vmem [shape: f32[2,4,1], index: 3, kind: output, shape index: {}]
  %s4 = sld [smem:[#allocation0]]
  $region65: #{tpu_custom_call.1} parent=0
    _
  %s6 = ssub.s32 1, %s4
  %s7 = scalar_select 0, %s6, %s4
  $region1: #{tpu_custom_call.1} parent=0
    #allocation4 [shape = 'u8[8192]{0}', space=vmem, size = 0x2000, scoped, tag = 'input window, operand 0']
    #allocation5 [shape = 's32[2]{0}', space=sflag, size = 0x8, scoped, tag = 'scoped memory for tpu_custom_call.1']
    #allocation6 [shape = 'u8[2048]{0}', space=vmem, size = 0x800, scoped, tag = 'input window, operand 1, single buffered']
    #allocation7 [shape = 's32[1]{0}', space=sflag, size = 0x4, scoped, tag = 'scoped memory for tpu_custom_call.1']
    %8 = vsyncpa [#allocation5], 0
    %s9 = scalar_lea.sflag [#allocation5], 1
    %10 = vsyncpa %s9, 0
    %11 = vsyncpa [#allocation7], 0
    loop: start=0, step=1, limit=4
    $region2: #{tpu_custom_call.1} parent=1 // loop_pre_header
      _
    $region3: #{tpu_custom_call.1} parent=1 // loop_header
      %s13 = sphi 0, %s17
      %p14 = scmp.ge.s32.totalorder %s13, 4
      %s20 = sphi 0, %s32
      %s21 = sphi 0, %s28
      %s22 = sphi 0, %s20
      %s23 = sphi 0, %s21
      %s24 = sphi 0, %s22
      %s25 = sphi 0, %s23
      %s37 = sphi 0, %s39
      %s40 = sphi 0, %s37
      %s41 = sphi 0, %s40
      %s57 = sphi 0, %s41
      %s61 = sphi 0, %s61
      %s63 = sphi 0, %s61
      %s64 = sphi 0, %s63
      %s78 = sphi 0, %s64
      %s82 = sphi 0, %s82
      %s84 = sphi 0, %s82
      %s85 = sphi 0, %s84
      %s99 = sphi 0, %s85
      %s105 = sphi 0, %s107
      %s108 = sphi 0, %s105
      %s109 = sphi 0, %s108
      %s125 = sphi 0, %s109
    $region4: #{tpu_custom_call.1} parent=1 // loop_header_branch
      %16 = sbr.rel (%p14) target = $region8
    $region5: #{tpu_custom_call.1} parent=1 // loop_body
      %s18 = ssub.s32 %s13, 1
      %s19 = ssub.s32 %s13, 2
      %s26 = sadd.s32 1, %s21
      %p27 = scmp.ge.s32.totalorder %s26, 1
      %s28 = scalar_select %p27, 0, %s26
      %s29 = sadd.s32 1, %s20
      %s30 = scalar_select %p27, %s29, %s20
      %p31 = scmp.ge.s32.totalorder %s30, 2
      %s32 = scalar_select %p31, 0, %s30
      %s33 = ssub.s32 %s20, %s32
      %s34 = ssub.s32 %s21, %s28
      %s35 = sor.u32 %s33, %s34
      %p36 = scmp.eq.s32.totalorder %s35, 0
      %s38 = sadd.s32 %s37, 1
      %s39 = scalar_select %p36, %s37, %s38
      %p42 = pneg %p36
      %p43 = scmp.eq.s32.totalorder %s13, 1
      %p44 = por %p42, %p43
      %p45 = scmp.ne.s32.totalorder %s37, %s40
      %p46 = scmp.eq.s32.totalorder %s13, 0
      %p47 = por %p45, %p46
      %p48 = scmp.ne.s32.totalorder %s37, %s40
      %p49 = scmp.eq.s32.totalorder %s18, 1
      %p50 = por %p48, %p49
      %p51 = scmp.ne.s32.totalorder %s40, %s41
      %p52 = scmp.eq.s32.totalorder %s18, 0
      %p53 = por %p51, %p52
      %p54 = scmp.ne.s32.totalorder %s40, %s41
      %p55 = scmp.eq.s32.totalorder %s19, 1
      %p56 = por %p54, %p55
      %p58 = scmp.ne.s32.totalorder %s41, %s57
      %p59 = scmp.eq.s32.totalorder %s19, 0
      %p60 = por %p58, %p59
      %s62 = sadd.s32 %s61, 1
      %p65 = scmp.eq.s32.totalorder %s13, 1
      %p66 = scmp.ne.s32.totalorder %s61, %s63
      %p67 = scmp.eq.s32.totalorder %s13, 0
      %p68 = por %p66, %p67
      %p69 = scmp.ne.s32.totalorder %s61, %s63
      %p70 = scmp.eq.s32.totalorder %s18, 1
      %p71 = por %p69, %p70
      %p72 = scmp.ne.s32.totalorder %s63, %s64
      %p73 = scmp.eq.s32.totalorder %s18, 0
      %p74 = por %p72, %p73
      %p75 = scmp.ne.s32.totalorder %s63, %s64
      %p76 = scmp.eq.s32.totalorder %s19, 1
      %p77 = por %p75, %p76
      %p79 = scmp.ne.s32.totalorder %s64, %s78
      %p80 = scmp.eq.s32.totalorder %s19, 0
      %p81 = por %p79, %p80
      %s83 = sadd.s32 %s82, 1
      %p86 = scmp.eq.s32.totalorder %s13, 1
      %p87 = scmp.ne.s32.totalorder %s82, %s84
      %p88 = scmp.eq.s32.totalorder %s13, 0
      %p89 = por %p87, %p88
      %p90 = scmp.ne.s32.totalorder %s82, %s84
      %p91 = scmp.eq.s32.totalorder %s18, 1
      %p92 = por %p90, %p91
      %p93 = scmp.ne.s32.totalorder %s84, %s85
      %p94 = scmp.eq.s32.totalorder %s18, 0
      %p95 = por %p93, %p94
      %p96 = scmp.ne.s32.totalorder %s84, %s85
      %p97 = scmp.eq.s32.totalorder %s19, 1
      %p98 = por %p96, %p97
      %p100 = scmp.ne.s32.totalorder %s85, %s99
      %p101 = scmp.eq.s32.totalorder %s19, 0
      %p102 = por %p100, %p101
      %s103 = ssub.s32 %s20, %s32
      %p104 = scmp.eq.s32.totalorder %s103, 0
      %s106 = sadd.s32 %s105, 1
      %s107 = scalar_select %p104, %s105, %s106
      %p110 = pneg %p104
      %p111 = scmp.eq.s32.totalorder %s13, 1
      %p112 = por %p110, %p111
      %p113 = scmp.ne.s32.totalorder %s105, %s108
      %p114 = scmp.eq.s32.totalorder %s13, 0
      %p115 = por %p113, %p114
      %p116 = scmp.ne.s32.totalorder %s105, %s108
      %p117 = scmp.eq.s32.totalorder %s18, 1
      %p118 = por %p116, %p117
      %p119 = scmp.ne.s32.totalorder %s108, %s109
      %p120 = scmp.eq.s32.totalorder %s18, 0
      %p121 = por %p119, %p120
      %p122 = scmp.ne.s32.totalorder %s108, %s109
      %p123 = scmp.eq.s32.totalorder %s19, 1
      %p124 = por %p122, %p123
      %p126 = scmp.ne.s32.totalorder %s109, %s125
      %p127 = scmp.eq.s32.totalorder %s19, 0
      %p128 = por %p126, %p127
      %p129 = scmp.le.s32.totalorder 1, %s13
      %p130 = scmp.lt.s32.totalorder %s13, 3
      %p131 = pnand %p129, %p130
      %p132 = pneg %p131
      // Predicated region
      $region9: #{tpu_custom_call.1} parent=5 // pred_check
        _
      $region10: #{tpu_custom_call.1} parent=5 // pred_check_branch
        %134 = sbr.rel (%p131) target = $region12
      $region11: #{tpu_custom_call.1} parent=5 // pred_region
        %s135 = ssub.s32 %s13, 1
        // Predicated region
        $region13: #{tpu_custom_call.1} parent=11 // pred_check
          %p136 = pneg %p74
        $region14: #{tpu_custom_call.1} parent=11 // pred_check_branch
          %138 = sbr.rel (%p136) target = $region16
        $region15: #{tpu_custom_call.1} parent=11 // pred_region
          %s140 = ssub.s32 64, 64
          %141 = vsyncadd [#allocation7], %s140
          %s143 = sshll.u32 [#allocation6], 4
          %s144 = int_to_ptr.vmem [resolvable:$true] %s143
          %146 = dma.hbm_to_vmem [thread:$0]  %s1, 64, %s144, [#allocation7]
        $region16: #{tpu_custom_call.1} parent=11 // pred_fallthru
          _
        // Predicated region
        $region17: #{tpu_custom_call.1} parent=11 // pred_check
          %p147 = pneg %p95
        $region18: #{tpu_custom_call.1} parent=11 // pred_check_branch
          %149 = sbr.rel (%p147) target = $region20
        $region19: #{tpu_custom_call.1} parent=11 // pred_region
          _
        $region20: #{tpu_custom_call.1} parent=11 // pred_fallthru
          _
      $region12: #{tpu_custom_call.1} parent=5 // pred_fallthru
        _
      %p150 = scmp.lt.s32.totalorder %s13, 2
      // Predicated region
      $region21: #{tpu_custom_call.1} parent=5 // pred_check
        %p151 = pneg %p150
      $region22: #{tpu_custom_call.1} parent=5 // pred_check_branch
        %153 = sbr.rel (%p151) target = $region24
      $region23: #{tpu_custom_call.1} parent=5 // pred_region
        // Predicated region
        $region25: #{tpu_custom_call.1} parent=23 // pred_check
          %p154 = pneg %p47
        $region26: #{tpu_custom_call.1} parent=23 // pred_check_branch
          %156 = sbr.rel (%p154) target = $region28
        $region27: #{tpu_custom_call.1} parent=23 // pred_region
          %s157 = sand.u32 %s37, 1
          %s158 = scalar_lea.sflag [#allocation5], %s157
          %s159 = sand.u32 %s37, 1
          %s160 = smul.addr %s159, 8
          %s161 = scalar_lea.vmem [#allocation4], %s160
          %s162 = smul.u32 2, %s21
          %s164 = ssub.s32 128, 128
          %165 = vsyncadd %s158, %s164
          %s166 = smul.addr %s20, 2
          %s167 = sadd.s32 %s162, %s166
          %s168 = smul.addr %s167, 64
          %s169 = scalar_lea.hbm %s0, %s168
          %s171 = sshll.u32 %s161, 4
          %s172 = int_to_ptr.vmem [resolvable:$true] %s171
          %174 = dma.hbm_to_vmem [thread:$0]  %s169, 128, %s172, %s158
        $region28: #{tpu_custom_call.1} parent=23 // pred_fallthru
          _
      $region24: #{tpu_custom_call.1} parent=5 // pred_fallthru
        _
      %p175 = scmp.le.s32.totalorder 1, %s13
      %p176 = scmp.lt.s32.totalorder %s13, 3
      %p177 = pnand %p175, %p176
      %p178 = pneg %p177
      // Predicated region
      $region29: #{tpu_custom_call.1} parent=5 // pred_check
        _
      $region30: #{tpu_custom_call.1} parent=5 // pred_check_branch
        %180 = sbr.rel (%p177) target = $region32
      $region31: #{tpu_custom_call.1} parent=5 // pred_region
        %s181 = ssub.s32 %s13, 1
        %s182 = sand.u32 %s40, 1
        %s183 = scalar_lea.sflag [#allocation5], %s182
        %s184 = sand.u32 %s40, 1
        %s185 = smul.addr %s184, 8
        %s186 = scalar_lea.vmem [#allocation4], %s185
        // Predicated region
        $region33: #{tpu_custom_call.1} parent=31 // pred_check
          %p187 = pneg %p53
        $region34: #{tpu_custom_call.1} parent=31 // pred_check_branch
          %189 = sbr.rel (%p187) target = $region36
        $region35: #{tpu_custom_call.1} parent=31 // pred_region
          %190 = dma.done %s183, 128
        $region36: #{tpu_custom_call.1} parent=31 // pred_fallthru
          _
        // Predicated region
        $region37: #{tpu_custom_call.1} parent=31 // pred_check
          %p191 = pneg %p74
        $region38: #{tpu_custom_call.1} parent=31 // pred_check_branch
          %193 = sbr.rel (%p191) target = $region40
        $region39: #{tpu_custom_call.1} parent=31 // pred_region
          %194 = dma.done [#allocation7], 64
        $region40: #{tpu_custom_call.1} parent=31 // pred_fallthru
          _
        %s195 = sand.u32 %s40, 1
        %s196 = scalar_lea.sflag [#allocation5], %s195
        %s197 = sand.u32 %s40, 1
        %s198 = smul.addr %s197, 8
        %s199 = scalar_lea.vmem [#allocation4], %s198
        %p200 = pneg %p53
        %p201 = pneg %p50
        %p202 = pneg %p74
        %p203 = pneg %p71
        %p204 = pneg %p95
        %p205 = pneg %p92
        %p206 = pneg %p121
        %p207 = pneg %p118
        %p208 = scmp.lt.s32.totalorder %s22, 1
        %s209 = scalar_select %p208, %s22, 1
        %s210 = smul.addr %s209, 4
        %s211 = scalar_lea.vmem %s3, %s210
        %s212 = smul.u32 2, %s23
        %p213 = scmp.lt.s32.totalorder %s22, 1
        %s214 = scalar_select %p213, %s22, 1
        %s215 = smul.addr %s214, 4
        %s216 = scalar_lea.vmem %s3, %s215
        %v217 = vld [vmem:[%s186] sm:$0xff]
        %v219 = vcombine.high %v217, %v217
        %vm221 = vcmask 1043456
        %v222 = vsel %vm221, %v217, 0.0
        %v223 = vsel %vm221, %v219, 0.0
        %v224 = vadd.f32 %v222, %v223
        %225 = vadd.xlane.f32.xlu0 %v224
        %v226 = vpop.xlane.xlu0 %225
        %v227 = vsel %vm221, %v217, -inf
        %v228 = vsel %vm221, %v219, -inf
        %v229 = vmax.f32 %v227, %v228
        %230 = vmax.xlane.f32.xlu0 %v229
        %v231 = vpop.xlane.xlu0 %230
        %p232 = scmp.eq.s32.totalorder %s23, 0
        // Predicated region
        $region41: #{tpu_custom_call.1} parent=31 // pred_check
          %p233 = pneg %p232
        $region42: #{tpu_custom_call.1} parent=31 // pred_check_branch
          %235 = sbr.rel (%p233) target = $region44
        $region43: #{tpu_custom_call.1} parent=31 // pred_region
          %vm236 = vcmask 3072
          %237 = vst.msk [vmem:[#allocation2] sm:$0xf] %vm236, %v226
          %238 = vst.msk [vmem:[#allocation3] sm:$0xf] %vm236, %v231
        $region44: #{tpu_custom_call.1} parent=31 // pred_fallthru
          _
        %p239 = scmp.gt.s32.totalorder %s23, 0
        // Predicated region
        $region45: #{tpu_custom_call.1} parent=31 // pred_check
          %p240 = pneg %p239
        $region46: #{tpu_custom_call.1} parent=31 // pred_check_branch
          %242 = sbr.rel (%p240) target = $region48
        $region47: #{tpu_custom_call.1} parent=31 // pred_region
          %v243 = vld [vmem:[#allocation2] sm:$0xf]
          %v244 = vadd.f32 %v243, %v226
          %vm245 = vcmask 3072
          %246 = vst.msk [vmem:[#allocation2] sm:$0xf] %vm245, %v244
          %v247 = vld [vmem:[#allocation3] sm:$0xf]
          %v248 = vmax.f32 %v247, %v231
          %249 = vst.msk [vmem:[#allocation3] sm:$0xf] %vm245, %v248
        $region48: #{tpu_custom_call.1} parent=31 // pred_fallthru
          _
        // Predicated region
        $region49: #{tpu_custom_call.1} parent=31 // pred_check
          %p250 = pneg %p232
        $region50: #{tpu_custom_call.1} parent=31 // pred_check_branch
          %252 = sbr.rel (%p250) target = $region52
        $region51: #{tpu_custom_call.1} parent=31 // pred_region
          %v253 = vld [vmem:[#allocation2] sm:$0xf]
          %v254 = vmul.f32 %v253, 0.00390625
          %v255 = vld [vmem:[#allocation3] sm:$0xf]
          %257 = vrot.lane.b32.xlu0 %v255, 1
          %v258 = vpop.permute.xlu0 %257
          %vm260 = vcmask 7168
          %v261 = vsel %vm260, %v254, %v258
          %v262 = vld [vmem:[#allocation6] sm:$0xf]
          %v263 = vld [vmem:[%s2] sm:$0xf]
          %vm264 = vcmask 31744
          %v266 = vsel %vm264, %v262, 0
          %v269 = vsel %vm221, %v261, 0
          %271 = vmatprep.subr.mxu0 0.0
          %272 = vmatpush1.msra.mxu0 %v269
          %273 = vmatprep.subr.mxu0 0.0
          %274 = vmatpush1.msra.mxu0 0.0
          %275 = vmatprep.subr.mxu0 0.0
          %276 = vmatpush1.msra.mxu0 0.0
          %277 = vmatprep.subr.mxu0 0.0
          %278 = vmatpush1.msra.mxu0 0.0
          %279 = vmatprep.subr.mxu0 0.0
          %280 = vmatpush1.msra.mxu0 0.0
          %281 = vmatprep.subr.mxu0 0.0
          %282 = vmatpush1.msra.mxu0 0.0
          %283 = vmatprep.subr.mxu0 0.0
          %284 = vmatpush1.msra.mxu0 0.0
          %285 = vmatprep.subr.mxu0 0.0
          %286 = vmatpush1.msra.mxu0 0.0
          %287 = vmatprep.subr.mxu0 0.0
          %288 = vmatpush1.msra.mxu0 0.0
          %289 = vmatprep.subr.mxu0 0.0
          %290 = vmatpush1.msra.mxu0 0.0
          %291 = vmatprep.subr.mxu0 0.0
          %292 = vmatpush1.msra.mxu0 0.0
          %293 = vmatprep.subr.mxu0 0.0
          %294 = vmatpush1.msra.mxu0 0.0
          %295 = vmatprep.subr.mxu0 0.0
          %296 = vmatpush1.msra.mxu0 0.0
          %297 = vmatprep.subr.mxu0 0.0
          %298 = vmatpush1.msra.mxu0 0.0
          %299 = vmatprep.subr.mxu0 0.0
          %300 = vmatpush1.msra.mxu0 0.0
          %301 = vmatprep.subr.mxu0 0.0
          %302 = vmatpush1.msra.mxu0 0.0
          %303 = vmatprep.subr.mxu0 0.0
          %304 = vmatpush1.msra.mxu0 0.0
          %305 = vmatprep.subr.mxu0 0.0
          %306 = vmatpush1.msra.mxu0 0.0
          %307 = vmatprep.subr.mxu0 0.0
          %308 = vmatpush1.msra.mxu0 0.0
          %309 = vmatprep.subr.mxu0 0.0
          %310 = vmatpush1.msra.mxu0 0.0
          %311 = vmatprep.subr.mxu0 0.0
          %312 = vmatpush1.msra.mxu0 0.0
          %313 = vmatprep.subr.mxu0 0.0
          %314 = vmatpush1.msra.mxu0 0.0
          %315 = vmatprep.subr.mxu0 0.0
          %316 = vmatpush1.msra.mxu0 0.0
          %317 = vmatprep.subr.mxu0 0.0
          %318 = vmatpush1.msra.mxu0 0.0
          %319 = vmatprep.subr.mxu0 0.0
          %320 = vmatpush1.msra.mxu0 0.0
          %321 = vmatprep.subr.mxu0 0.0
          %322 = vmatpush1.msra.mxu0 0.0
          %323 = vmatprep.subr.mxu0 0.0
          %324 = vmatpush1.msra.mxu0 0.0
          %325 = vmatprep.subr.mxu0 0.0
          %326 = vmatpush1.msra.mxu0 0.0
          %327 = vmatprep.subr.mxu0 0.0
          %328 = vmatpush1.msra.mxu0 0.0
          %329 = vmatprep.subr.mxu0 0.0
          %330 = vmatpush1.msra.mxu0 0.0
          %331 = vmatprep.subr.mxu0 0.0
          %332 = vmatpush1.msra.mxu0 0.0
          %333 = vmatprep.subr.mxu0 0.0
          %334 = vmatpush1.msra.mxu0 0.0
          %335 = vmatprep.mubr.f32.mxu0 0.0
          %336 = vmatmul.mubr.f32.gmra.mrb[0].mxu0 %v266
          %v337 = vpop.f32.mrb[0].mxu0
          %v338 = vadd.f32 0.0, %v337
          %v339 = vpop.f32.mrb[0].mxu0
          %340 = vdwg.mxu0
          %v341 = vmax.f32 %v338, 0.0
          %v343 = vsel %vm264, %v263, 0
          %v346 = vsel %vm221, %v341, 0
          %348 = vmatprep.subr.mxu0 0.0
          %349 = vmatpush1.msra.mxu0 %v346
          %350 = vmatprep.subr.mxu0 0.0
          %351 = vmatpush1.msra.mxu0 0.0
          %352 = vmatprep.subr.mxu0 0.0
          %353 = vmatpush1.msra.mxu0 0.0
          %354 = vmatprep.subr.mxu0 0.0
          %355 = vmatpush1.msra.mxu0 0.0
          %356 = vmatprep.subr.mxu0 0.0
          %357 = vmatpush1.msra.mxu0 0.0
          %358 = vmatprep.subr.mxu0 0.0
          %359 = vmatpush1.msra.mxu0 0.0
          %360 = vmatprep.subr.mxu0 0.0
          %361 = vmatpush1.msra.mxu0 0.0
          %362 = vmatprep.subr.mxu0 0.0
          %363 = vmatpush1.msra.mxu0 0.0
          %364 = vmatprep.subr.mxu0 0.0
          %365 = vmatpush1.msra.mxu0 0.0
          %366 = vmatprep.subr.mxu0 0.0
          %367 = vmatpush1.msra.mxu0 0.0
          %368 = vmatprep.subr.mxu0 0.0
          %369 = vmatpush1.msra.mxu0 0.0
          %370 = vmatprep.subr.mxu0 0.0
          %371 = vmatpush1.msra.mxu0 0.0
          %372 = vmatprep.subr.mxu0 0.0
          %373 = vmatpush1.msra.mxu0 0.0
          %374 = vmatprep.subr.mxu0 0.0
          %375 = vmatpush1.msra.mxu0 0.0
          %376 = vmatprep.subr.mxu0 0.0
          %377 = vmatpush1.msra.mxu0 0.0
          %378 = vmatprep.subr.mxu0 0.0
          %379 = vmatpush1.msra.mxu0 0.0
          %380 = vmatprep.subr.mxu0 0.0
          %381 = vmatpush1.msra.mxu0 0.0
          %382 = vmatprep.subr.mxu0 0.0
          %383 = vmatpush1.msra.mxu0 0.0
          %384 = vmatprep.subr.mxu0 0.0
          %385 = vmatpush1.msra.mxu0 0.0
          %386 = vmatprep.subr.mxu0 0.0
          %387 = vmatpush1.msra.mxu0 0.0
          %388 = vmatprep.subr.mxu0 0.0
          %389 = vmatpush1.msra.mxu0 0.0
          %390 = vmatprep.subr.mxu0 0.0
          %391 = vmatpush1.msra.mxu0 0.0
          %392 = vmatprep.subr.mxu0 0.0
          %393 = vmatpush1.msra.mxu0 0.0
          %394 = vmatprep.subr.mxu0 0.0
          %395 = vmatpush1.msra.mxu0 0.0
          %396 = vmatprep.subr.mxu0 0.0
          %397 = vmatpush1.msra.mxu0 0.0
          %398 = vmatprep.subr.mxu0 0.0
          %399 = vmatpush1.msra.mxu0 0.0
          %400 = vmatprep.subr.mxu0 0.0
          %401 = vmatpush1.msra.mxu0 0.0
          %402 = vmatprep.subr.mxu0 0.0
          %403 = vmatpush1.msra.mxu0 0.0
          %404 = vmatprep.subr.mxu0 0.0
          %405 = vmatpush1.msra.mxu0 0.0
          %406 = vmatprep.subr.mxu0 0.0
          %407 = vmatpush1.msra.mxu0 0.0
          %408 = vmatprep.subr.mxu0 0.0
          %409 = vmatpush1.msra.mxu0 0.0
          %410 = vmatprep.subr.mxu0 0.0
          %411 = vmatpush1.msra.mxu0 0.0
          %412 = vmatprep.mubr.f32.mxu0 0.0
          %413 = vmatmul.mubr.f32.gmra.mrb[0].mxu0 %v343
          %v414 = vpop.f32.mrb[0].mxu0
          %v415 = vadd.f32 0.0, %v414
          %v416 = vpop.f32.mrb[0].mxu0
          %417 = vdwg.mxu0
          %419 = vrot.lane.b32.xlu0 %v415, 127
          %v420 = vpop.permute.xlu0 %419
          %v422 = vadd.f32 %v415, %v420
          %v423 = vxor.u32 %v422, 2147483648
          %v424 = vmul.f32 %v423, 1.442695
          %v425 = vpow.pop %v424
          %v426 = vadd.f32 %v425, 1.0
          %v427 = vrcp.pop %v426
          %v428 = vmul.f32 1.0, %v427
          %vm429 = vcmask 3072
          %430 = vst.msk [vmem:[%s216] sm:$0xf] %vm429, %v428
        $region52: #{tpu_custom_call.1} parent=31 // pred_fallthru
          _
        %p431 = scmp.lt.s32.totalorder %s22, 1
        %s432 = scalar_select %p431, %s22, 1
        %s433 = smul.addr %s432, 4
        %s434 = scalar_lea.vmem %s3, %s433
        // Predicated region
        $region53: #{tpu_custom_call.1} parent=31 // pred_check
          %p435 = pneg %p118
        $region54: #{tpu_custom_call.1} parent=31 // pred_check_branch
          %437 = sbr.rel (%p435) target = $region56
        $region55: #{tpu_custom_call.1} parent=31 // pred_region
          _
        $region56: #{tpu_custom_call.1} parent=31 // pred_fallthru
          _
      $region32: #{tpu_custom_call.1} parent=5 // pred_fallthru
        _
      %p438 = scmp.le.s32.totalorder 2, %s13
      // Predicated region
      $region57: #{tpu_custom_call.1} parent=5 // pred_check
        %p439 = pneg %p438
      $region58: #{tpu_custom_call.1} parent=5 // pred_check_branch
        %441 = sbr.rel (%p439) target = $region60
      $region59: #{tpu_custom_call.1} parent=5 // pred_region
        %s442 = ssub.s32 %s13, 2
        // Predicated region
        $region61: #{tpu_custom_call.1} parent=59 // pred_check
          %p443 = pneg %p124
        $region62: #{tpu_custom_call.1} parent=59 // pred_check_branch
          %445 = sbr.rel (%p443) target = $region64
        $region63: #{tpu_custom_call.1} parent=59 // pred_region
          %p446 = scmp.lt.s32.totalorder %s24, 1
          %s447 = scalar_select %p446, %s24, 1
          %s448 = smul.addr %s447, 4
          %s449 = scalar_lea.vmem %s3, %s448
        $region64: #{tpu_custom_call.1} parent=59 // pred_fallthru
          _
      $region60: #{tpu_custom_call.1} parent=5 // pred_fallthru
        _
    $region6: #{tpu_custom_call.1} parent=1 // loop_footer
      %s17 = sadd.s32 1, %s13
    $region7: #{tpu_custom_call.1} parent=1 // loop_footer_branch
      %12 = sbr.rel target = $region3
    $region8: #{tpu_custom_call.1} parent=1 // loop_exit
      _
    %450 = vsyncpa [#allocation5], 1
    %s451 = scalar_lea.sflag [#allocation5], 1
    %452 = vsyncpa %s451, 1
    %453 = vsyncpa [#allocation7], 1

</llo_original>
